<compile_context>
chip_gen: v7x
topology: tpu7x:2x2x1
jax: 0.10.0
libtpu: 0.0.40
codegen_flags: <defaults>
</compile_context>

<pallas_src>
import jax
import jax.numpy as jnp
from jax.experimental import pallas as pl
from jax.experimental.pallas import tpu as pltpu


def _make_rbf_kernel(neg_gamma: float):
    """Build an RBF kernel with gamma folded in as a trace-time constant."""

    def _rbf_kernel(dist_ref, mu_ref, out_ref):
        # dist_ref : (TM, 1)       block in VMEM (lane-padded to 128 by HW)
        # mu_ref   : (1, RBF_DIM)  block in VMEM (resident across grid steps)
        # out_ref  : (TM, RBF_DIM) block in VMEM
        d = dist_ref[...]                         # (TM, 1) f32
        mu = mu_ref[...]                          # (1, RBF_DIM) f32
        diff = d - mu                             # VPU broadcast -> (TM, RBF_DIM)
        val = jnp.exp(neg_gamma * (diff * diff))  # EUP exp, f32
        out_ref[...] = val.astype(out_ref.dtype)  # cast only at the store

    return _rbf_kernel


def rbf_pallas(dist: jax.Array, mu_k: jax.Array, gamma: float, *,
               tm: int = 2048, out_dtype=jnp.float32) -> jax.Array:
    """Pallas implementation of RBF.forward.

    dist      : arbitrary-shape float array (flattened to (N, 1) like .view(-1, 1))
    mu_k      : (rbf_dim,) float32
    gamma     : python float (trace-time constant)
    tm        : N-tile size (sweepable; 2048 default, 4096 worth trying on v6e/v7x)
    out_dtype : output dtype (float32 preserves module semantics; bfloat16 halves
                HBM write bytes if the consumer tolerates it)
    returns (N, rbf_dim) array of out_dtype.
    """
    dist_flat = jnp.reshape(dist, (-1, 1)).astype(jnp.float32)
    n = dist_flat.shape[0]
    rbf_dim = mu_k.shape[0]
    mu2d = jnp.reshape(mu_k, (1, rbf_dim)).astype(jnp.float32)

    # Clamp the tile for small N (keep sublane-aligned: multiple of 8).
    n_up8 = max(8, ((n + 7) // 8) * 8)
    tm = max(8, min(int(tm), n_up8))
    tm = ((tm + 7) // 8) * 8

    grid = (pl.cdiv(n, tm),)

    # ---- Honest VMEM budget (per pipeline buffer), used to set the scoped
    # VMEM limit explicitly so larger tm sweeps don't trip the 16 MiB v5e
    # default.  Everything below is double-buffered by the BlockSpec pipeline.
    lane = 128
    sublane = 8
    rbf_pad = ((rbf_dim + lane - 1) // lane) * lane          # 300 -> 384 lanes
    out_itemsize = jnp.dtype(out_dtype).itemsize
    per_buffer_bytes = (
        tm * rbf_pad * out_itemsize          # out tile
        + tm * lane * 4                      # dist tile: (tm,1) lane-pads 128x
        + sublane * rbf_pad * 4              # mu tile: (1,rbf) sublane-pads to 8
    )
    vmem_limit_bytes = int(2 * per_buffer_bytes * 1.25) + (2 << 20)  # 2 bufs + slack
    vmem_limit_bytes = max(vmem_limit_bytes, 4 << 20)
    vmem_limit_bytes = min(vmem_limit_bytes, 48 << 20)  # headroom on v7x 64 MiB VMEM

    kernel = _make_rbf_kernel(float(-gamma))

    cost = pl.CostEstimate(
        flops=3 * n * rbf_dim,                                  # sub, mul, mul
        transcendentals=n * rbf_dim,                            # exp on EUP
        bytes_accessed=n * rbf_dim * out_itemsize + (n + rbf_dim) * 4,
    )

    out = pl.pallas_call(
        kernel,
        out_shape=jax.ShapeDtypeStruct((n, rbf_dim), out_dtype),
        grid_spec=pltpu.PrefetchScalarGridSpec(
            num_scalar_prefetch=0,
            grid=grid,
            in_specs=[
                pl.BlockSpec((tm, 1), lambda i: (i, 0)),          # dist tile
                pl.BlockSpec((1, rbf_dim), lambda i: (0, 0)),     # mu_k (resident)
            ],
            out_specs=pl.BlockSpec((tm, rbf_dim), lambda i: (i, 0)),
        ),
        compiler_params=pltpu.CompilerParams(
            dimension_semantics=("parallel",),   # shard N-tiles (v7x megacore)
            vmem_limit_bytes=vmem_limit_bytes,
        ),
        cost_estimate=cost,
    )(dist_flat, mu2d)

    return out


if __name__ == "__main__":
    # Deterministic parameters matching RBF.__init__ (rbf_dim=300, gamma=10.0).
    rbf_dim = 300
    gamma = 10.0
    mu_k = jnp.linspace(0.0, 30.0, rbf_dim, dtype=jnp.float32)

    # Small example input: a (2, 8) batch of distances in [0, 30).
    key = jax.random.PRNGKey(0)
    dist = jax.random.uniform(key, (2, 8), dtype=jnp.float32, minval=0.0, maxval=30.0)

    out = rbf_pallas(dist, mu_k, gamma)
    out = jax.block_until_ready(out)

    # Reference check in plain JAX (same math as the PyTorch forward).
    ref = jnp.exp(-gamma * (dist.reshape(-1, 1) - mu_k.reshape(1, -1)) ** 2)
    assert out.shape == (16, rbf_dim), out.shape
    assert out.dtype == jnp.float32, out.dtype
    assert jnp.allclose(out, ref, atol=1e-6, rtol=1e-6)

    # Also exercise a larger, ragged N to cover the multi-step pipelined path.
    key2 = jax.random.PRNGKey(1)
    dist_big = jax.random.uniform(key2, (5000,), dtype=jnp.float32, minval=0.0, maxval=30.0)
    out_big = jax.block_until_ready(rbf_pallas(dist_big, mu_k, gamma))
    ref_big = jnp.exp(-gamma * (dist_big.reshape(-1, 1) - mu_k.reshape(1, -1)) ** 2)
    assert out_big.shape == (5000, rbf_dim), out_big.shape
    assert jnp.allclose(out_big, ref_big, atol=1e-6, rtol=1e-6)

    print("KERNEL_OK")
</pallas_src>

<mosaic_0001>
module attributes {stable_mosaic.version = 11 : i64} {
  func.func @_rbf_kernel(%arg0: i32, %arg1: memref<16x1xf32, #tpu.memory_space<vmem>>, %arg2: memref<1x300xf32, #tpu.memory_space<vmem>>, %arg3: memref<16x300xf32, #tpu.memory_space<vmem>>) attributes {dimension_semantics = [#tpu.dimension_semantics<parallel>], iteration_bounds = array<i64: 1>, scalar_prefetch = 0 : i64, scratch_operands = 0 : i64, tpu.core_type = #tpu.core_type<tc>, window_params = [{transform_indices = @transform_0, window_bounds = array<i64: 16, 1>}, {pipeline_mode = #tpu.pipeline_mode<synchronous>, transform_indices = @transform_1, window_bounds = array<i64: 1, 300>}, {transform_indices = @transform_2, window_bounds = array<i64: 16, 300>}]} {
    %c0 = arith.constant 0 : index
    %c0_0 = arith.constant 0 : index
    %0 = vector.load %arg1[%c0, %c0_0] : memref<16x1xf32, #tpu.memory_space<vmem>>, vector<16x1xf32>
    %c0_1 = arith.constant 0 : index
    %c0_2 = arith.constant 0 : index
    %1 = vector.load %arg2[%c0_1, %c0_2] : memref<1x300xf32, #tpu.memory_space<vmem>>, vector<1x300xf32>
    %2 = vector.broadcast %0 : vector<16x1xf32> to vector<16x300xf32>
    %3 = vector.broadcast %1 : vector<1x300xf32> to vector<16x300xf32>
    %4 = arith.subf %2, %3 : vector<16x300xf32>
    %5 = arith.mulf %4, %4 : vector<16x300xf32>
    %cst = arith.constant -1.000000e+01 : f32
    %6 = vector.broadcast %cst : f32 to vector<16x300xf32>
    %7 = arith.mulf %6, %5 : vector<16x300xf32>
    %8 = math.exp %7 : vector<16x300xf32>
    %c0_3 = arith.constant 0 : index
    %c0_4 = arith.constant 0 : index
    %9 = vector.load %arg3[%c0_3, %c0_4] : memref<16x300xf32, #tpu.memory_space<vmem>>, vector<16x300xf32>
    tpu.vector_store %arg3[%c0_3, %c0_4], %8 {strides = array<i32>} : memref<16x300xf32, #tpu.memory_space<vmem>>, vector<16x300xf32>,
    return
  }
  func.func @transform_0(%arg0: i32) -> (i32, i32) {
    %c0_i32 = arith.constant 0 : i32
    %c0_i32_0 = arith.constant 0 : i32
    return %arg0, %c0_i32 : i32, i32
  }
  func.func @transform_1(%arg0: i32) -> (i32, i32) {
    %c0_i32 = arith.constant 0 : i32
    %c0_i32_0 = arith.constant 0 : i32
    %c0_i32_1 = arith.constant 0 : i32
    return %c0_i32, %c0_i32_0 : i32, i32
  }
  func.func @transform_2(%arg0: i32) -> (i32, i32) {
    %c0_i32 = arith.constant 0 : i32
    %c0_i32_0 = arith.constant 0 : i32
    return %arg0, %c0_i32 : i32, i32
  }
}

</mosaic_0001>

<llo_original>
// kernel: tpu_custom_call.1
$region0: #{tpu_custom_call.1}
  #allocation0 [shape = 'u32[]', space=smem, size = 0x4, offset = 0x4, fixed_abs, tag = 'smem constant byte address 0x4 - core index']
  #allocation1 [shape = 'u32[144,128]{1,0:T(1,128)}', space=vmem, size = 0x12000, scoped, tag = 'internal scratch']
  %s0 = inlined_call_operand.vmem [shape: f32[16,1], index: 0, kind: input, shape index: {}]
  %s1 = inlined_call_operand.vmem [shape: f32[1,300], index: 1, kind: input, shape index: {}]
  %s2 = inlined_call_operand.hbm [shape: f32[16,300], index: 2, kind: output, shape index: {}]
  %s3 = sld [smem:[#allocation0]]
  $region18: #{tpu_custom_call.1} parent=0
    _
  %s5 = ssub.s32 1, %s3
  %s6 = scalar_select 0, %s5, %s3
  $region1: #{tpu_custom_call.1} parent=0
    #allocation2 [shape = 'u8[24576]{0}', space=vmem, size = 0x6000, scoped, tag = 'output window, operand 0, single buffered']
    #allocation3 [shape = 's32[1]{0}', space=sflag, size = 0x4, scoped, tag = 'scoped memory for tpu_custom_call.1']
    %7 = vsyncpa [#allocation3], 0
    // Predicated region
    $region2: #{tpu_custom_call.1} parent=1 // pred_check
      _
    $region3: #{tpu_custom_call.1} parent=1 // pred_check_branch
      %9 = sbr.rel (0) target = $region5
    $region4: #{tpu_custom_call.1} parent=1 // pred_region
      _
    $region5: #{tpu_custom_call.1} parent=1 // pred_fallthru
      _
    // Predicated region
    $region6: #{tpu_custom_call.1} parent=1 // pred_check
      _
    $region7: #{tpu_custom_call.1} parent=1 // pred_check_branch
      %11 = sbr.rel (0) target = $region9
    $region8: #{tpu_custom_call.1} parent=1 // pred_region
      _
    $region9: #{tpu_custom_call.1} parent=1 // pred_fallthru
      _
    %v12 = vld [vmem:[%s0] sm:$0xff]
    %v13 = vld [vmem:[%s0 + $0x8] sm:$0xff]
    %v14 = vld [vmem:[%s1] sm:$0x7]
    %16 = vset.pattern.permute.xlu0 0
    %17 = vperm.xlu0 %16, %v12
    %v18 = vpop.permute.xlu0 %17
    %21 = vset.pattern.permute.xlu0 0
    %22 = vperm.xlu0 %21, %v13
    %v23 = vpop.permute.xlu0 %22
    %v26 = vlaneseq
    %v27 = vshrl.u32 %v26, 7
    %v28 = vsub.s32 0, %v27
    %v29 = vrot.slane %v14, %v28
    %v30 = vlaneseq
    %v31 = vshrl.u32 %v30, 7
    %v32 = vsub.s32 1, %v31
    %v33 = vrot.slane %v14, %v32
    %v34 = vlaneseq
    %v35 = vshrl.u32 %v34, 7
    %v36 = vsub.s32 2, %v35
    %v37 = vrot.slane %v14, %v36
    %v41 = vsub.f32 %v18, %v29
    %v42 = vsub.f32 %v18, %v33
    %v43 = vsub.f32 %v18, %v37
    %v44 = vsub.f32 %v23, %v29
    %v45 = vsub.f32 %v23, %v33
    %v46 = vsub.f32 %v23, %v37
    %v47 = vmul.f32 %v41, %v41
    %v48 = vmul.f32 %v42, %v42
    %v49 = vmul.f32 %v43, %v43
    %v50 = vmul.f32 %v44, %v44
    %v51 = vmul.f32 %v45, %v45
    %v52 = vmul.f32 %v46, %v46
    %v53 = vmul.f32 %v47, -10.0
    %v54 = vmul.f32 %v48, -10.0
    %v55 = vmul.f32 %v49, -10.0
    %v56 = vmul.f32 %v50, -10.0
    %v57 = vmul.f32 %v51, -10.0
    %v58 = vmul.f32 %v52, -10.0
    %v59 = vmul.f32 %v53, 1.442695
    %v60 = vpow.pop %v59
    %v61 = vmul.f32 %v54, 1.442695
    %v62 = vpow.pop %v61
    %v63 = vmul.f32 %v55, 1.442695
    %v64 = vpow.pop %v63
    %v65 = vmul.f32 %v56, 1.442695
    %v66 = vpow.pop %v65
    %v67 = vmul.f32 %v57, 1.442695
    %v68 = vpow.pop %v67
    %v69 = vmul.f32 %v58, 1.442695
    %v70 = vpow.pop %v69
    %71 = vst [vmem:[#allocation2] sm:$0xff] %v60
    %72 = vst [vmem:[#allocation2 + $0x8] sm:$0xff] %v62
    %vm73 = vcmask 359424
    %74 = vst.msk [vmem:[#allocation2 + $0x10] sm:$0xff] %vm73, %v64
    %75 = vst [vmem:[#allocation2 + $0x18] sm:$0xff] %v66
    %76 = vst [vmem:[#allocation2 + $0x20] sm:$0xff] %v68
    %77 = vst.msk [vmem:[#allocation2 + $0x28] sm:$0xff] %vm73, %v70
    // Predicated region
    $region10: #{tpu_custom_call.1} parent=1 // pred_check
      _
    $region11: #{tpu_custom_call.1} parent=1 // pred_check_branch
      %79 = sbr.rel (0) target = $region13
    $region12: #{tpu_custom_call.1} parent=1 // pred_region
      %s81 = ssub.s32 768, 768
      %82 = vsyncadd [#allocation3], %s81
      %s83 = sshll.u32 [#allocation2], 4
      %s84 = int_to_ptr.vmem [resolvable:$true] %s83
      %89 = dma.vmem_to_hbm [thread:$0]  %s84, 768, %s2, [#allocation3], 384, 384, 24
    $region13: #{tpu_custom_call.1} parent=1 // pred_fallthru
      _
    // Predicated region
    $region14: #{tpu_custom_call.1} parent=1 // pred_check
      _
    $region15: #{tpu_custom_call.1} parent=1 // pred_check_branch
      %91 = sbr.rel (0) target = $region17
    $region16: #{tpu_custom_call.1} parent=1 // pred_region
      %92 = dma.done [#allocation3], 768
    $region17: #{tpu_custom_call.1} parent=1 // pred_fallthru
      _
    %93 = vsyncpa [#allocation3], 1

</llo_original>
